<compile_context>
chip_gen: v5e
topology: v5e:2x2
jax: 0.10.0
libtpu: 0.0.40
codegen_flags: <defaults>
</compile_context>

<pallas_src>
import numpy as np
import jax
import jax.numpy as jnp
from jax.experimental import pallas as pl
from jax.experimental.pallas import tpu as pltpu


def _pick_batch_block(B, row_bytes, target_bytes=1 << 19):
    """Batch rows per grid step: aim for ~0.5 MiB/step, keep >=2 grid steps when
    B > 1 (pipelining / dual-TC), and return a divisor of B (no partial blocks)."""
    bb = max(1, min(B, target_bytes // max(row_bytes, 1)))
    if B > 1:
        bb = min(bb, (B + 1) // 2)
    while B % bb:
        bb -= 1
    return bb


def learned_position_encoding(x, var_pos, emb_table):
    """x: [B, max_len, d_model], var_pos: [B, var_len] int, emb_table: [n_emb, d_model]."""
    B, max_len, d_model = x.shape
    var_len = var_pos.shape[1]
    n_emb = emb_table.shape[0]
    assert var_len + 1 <= n_emb, "embedding table too small for pos ids"

    # --- wrapper-side prep (cheap, O(B*var_len) ints) -------------------------
    var_pos = var_pos.astype(jnp.int32)
    vp_min = jnp.min(var_pos)                       # GLOBAL min, as in the module
    j_ids = jnp.arange(1, var_len + 1, dtype=jnp.int32)
    pos_id = jnp.where(var_pos == vp_min, jnp.int32(0), j_ids[None, :])

    vp_flat = var_pos.reshape(B * var_len)          # 1D -> next-pow2 SMEM padding only
    pid_flat = pos_id.reshape(B * var_len)

    # Only rows 0..var_len of the table are reachable (values of loc_mat).
    # Shape (rows, 1, d_model): dynamic row reads are leading-axis slices.
    emb_rows = emb_table[: var_len + 1].reshape(var_len + 1, 1, d_model)

    row_bytes = max_len * d_model * x.dtype.itemsize
    bb = _pick_batch_block(B, row_bytes)

    def kernel(vp_ref, pid_ref, x_ref, emb_ref, o_ref):
        # vp_ref / pid_ref : SMEM [B*var_len] int32  (scalar prefetch)
        # x_ref / o_ref    : VMEM [bb, max_len, d_model]
        # emb_ref          : VMEM [var_len+1, 1, d_model]  (grid-invariant)
        bgrid = pl.program_id(0)

        # Pass 1 (streaming, HBM-bound): loc_mat defaults to 0 -> emb row 0.
        base = emb_ref[0]                                      # (1, d_model)
        o_ref[...] = (x_ref[...] + base[None]).astype(o_ref.dtype)

        # Pass 2: var_len tiny d_model-wide overwrites per batch row.
        # Ascending j => last-write-wins for duplicate scatter indices.
        # TODO(synk): for very large bb*var_len switch to lax.fori_loop to bound
        #             unrolled code size (all indices here also support dynamic form).
        for bi in range(bb):
            flat0 = (bgrid * bb + bi) * var_len
            for j in range(var_len):
                p = vp_ref[flat0 + j]
                pid = pid_ref[flat0 + j]

                @pl.when((p >= 0) & (p < max_len))             # drop OOB indices safely
                def _(bi=bi, p=p, pid=pid):
                    row = emb_ref[pid]                         # (1, d_model) dynamic read
                    o_ref[bi, pl.ds(p, 1), :] = (
                        x_ref[bi, pl.ds(p, 1), :] + row
                    ).astype(o_ref.dtype)

    grid_spec = pltpu.PrefetchScalarGridSpec(
        num_scalar_prefetch=2,                                 # var_pos, pos_id -> SMEM
        grid=(B // bb,),
        in_specs=[
            pl.BlockSpec((bb, max_len, d_model), lambda b, vp, pid: (b, 0, 0)),
            pl.BlockSpec((var_len + 1, 1, d_model), lambda b, vp, pid: (0, 0, 0)),
        ],
        out_specs=pl.BlockSpec((bb, max_len, d_model), lambda b, vp, pid: (b, 0, 0)),
    )

    return pl.pallas_call(
        kernel,
        out_shape=jax.ShapeDtypeStruct((B, max_len, d_model), x.dtype),
        grid_spec=grid_spec,
        compiler_params=pltpu.CompilerParams(
            dimension_semantics=("parallel",)),
    )(vp_flat, pid_flat, x, emb_rows)


def _reference(x, var_pos, emb_table):
    x = np.asarray(x)
    var_pos = np.asarray(var_pos)
    emb_table = np.asarray(emb_table)
    B, max_len, _ = x.shape
    var_len = var_pos.shape[1]
    mn = var_pos.min()
    loc = np.zeros((B, max_len), np.int32)
    for b in range(B):
        for j in range(var_len):
            pid = 0 if var_pos[b, j] == mn else j + 1
            loc[b, var_pos[b, j]] = pid
    return x + emb_table[loc]


if __name__ == "__main__":
    B, max_len, d_model, var_len = 2, 20, 32, 8

    key = jax.random.PRNGKey(0)
    kx, ke = jax.random.split(key)
    x = jax.random.normal(kx, (B, max_len, d_model), dtype=jnp.float32)
    # nn.Embedding(max_len=20, d_model) default init: N(0, 1)
    emb_table = jax.random.normal(ke, (max_len, d_model), dtype=jnp.float32)

    # valid scatter indices into [0, max_len); 0 acts as the padding / min value
    var_pos = jnp.array(
        [[0, 3, 5, 7, 9, 11, 0, 0],
         [2, 4, 6, 8, 10, 12, 14, 0]], dtype=jnp.int32)

    lpe = jax.jit(learned_position_encoding)
    out = jax.block_until_ready(lpe(x, var_pos, emb_table))

    ref = _reference(x, var_pos, emb_table)
    np.testing.assert_allclose(np.asarray(out), ref, rtol=1e-5, atol=1e-5)

    print("KERNEL_OK")
</pallas_src>

<mosaic_0001>
module attributes {stable_mosaic.version = 11 : i64} {
  func.func @kernel(%arg0: i32, %arg1: memref<16xi32, #tpu.memory_space<smem>>, %arg2: memref<16xi32, #tpu.memory_space<smem>>, %arg3: memref<1x20x32xf32, #tpu.memory_space<vmem>>, %arg4: memref<9x1x32xf32, #tpu.memory_space<vmem>>, %arg5: memref<1x20x32xf32, #tpu.memory_space<vmem>>) attributes {dimension_semantics = [#tpu.dimension_semantics<parallel>], iteration_bounds = array<i64: 2>, scalar_prefetch = 2 : i64, scratch_operands = 0 : i64, tpu.core_type = #tpu.core_type<tc>, window_params = [{transform_indices = @transform_0, window_bounds = array<i64: 1, 20, 32>}, {pipeline_mode = #tpu.pipeline_mode<synchronous>, transform_indices = @transform_1, window_bounds = array<i64: 9, 1, 32>}, {transform_indices = @transform_2, window_bounds = array<i64: 1, 20, 32>}]} {
    %c0 = arith.constant 0 : index
    %c0_0 = arith.constant 0 : index
    %c0_1 = arith.constant 0 : index
    %0 = vector.load %arg4[%c0, %c0_0, %c0_1] : memref<9x1x32xf32, #tpu.memory_space<vmem>>, vector<1x1x32xf32>
    %1 = vector.shape_cast %0 : vector<1x1x32xf32> to vector<1x32xf32>
    %c0_2 = arith.constant 0 : index
    %c0_3 = arith.constant 0 : index
    %c0_4 = arith.constant 0 : index
    %2 = vector.load %arg3[%c0_2, %c0_3, %c0_4] : memref<1x20x32xf32, #tpu.memory_space<vmem>>, vector<1x20x32xf32>
    %3 = vector.shape_cast %1 : vector<1x32xf32> to vector<1x1x32xf32>
    %4 = vector.broadcast %3 : vector<1x1x32xf32> to vector<1x20x32xf32>
    %5 = arith.addf %2, %4 : vector<1x20x32xf32>
    %c0_5 = arith.constant 0 : index
    %c0_6 = arith.constant 0 : index
    %c0_7 = arith.constant 0 : index
    %6 = vector.load %arg5[%c0_5, %c0_6, %c0_7] : memref<1x20x32xf32, #tpu.memory_space<vmem>>, vector<1x20x32xf32>
    tpu.vector_store %arg5[%c0_5, %c0_6, %c0_7], %5 {strides = array<i32>} : memref<1x20x32xf32, #tpu.memory_space<vmem>>, vector<1x20x32xf32>,
    %c1_i32 = arith.constant 1 : i32
    %7 = arith.muli %arg0, %c1_i32 : i32
    %c0_i32 = arith.constant 0 : i32
    %8 = arith.addi %7, %c0_i32 : i32
    %c8_i32 = arith.constant 8 : i32
    %9 = arith.muli %8, %c8_i32 : i32
    %c0_i32_8 = arith.constant 0 : i32
    %10 = arith.addi %9, %c0_i32_8 : i32
    %11 = arith.index_cast %10 : i32 to index
    %12 = memref.load %arg1[%11] : memref<16xi32, #tpu.memory_space<smem>>
    %c0_i32_9 = arith.constant 0 : i32
    %13 = arith.addi %9, %c0_i32_9 : i32
    %14 = arith.index_cast %13 : i32 to index
    %15 = memref.load %arg2[%14] : memref<16xi32, #tpu.memory_space<smem>>
    %c0_i32_10 = arith.constant 0 : i32
    %16 = arith.cmpi sge, %12, %c0_i32_10 : i32
    %c20_i32 = arith.constant 20 : i32
    %17 = arith.cmpi slt, %12, %c20_i32 : i32
    %18 = arith.andi %16, %17 : i1
    %19 = arith.extui %18 : i1 to i32
    %c0_i32_11 = arith.constant 0 : i32
    %20 = arith.cmpi ne, %19, %c0_i32_11 : i32
    scf.if %20 {
      %98 = arith.index_cast %15 : i32 to index
      %c0_41 = arith.constant 0 : index
      %c0_42 = arith.constant 0 : index
      %99 = vector.load %arg4[%98, %c0_41, %c0_42] : memref<9x1x32xf32, #tpu.memory_space<vmem>>, vector<1x1x32xf32>
      %100 = vector.shape_cast %99 : vector<1x1x32xf32> to vector<1x32xf32>
      %c0_43 = arith.constant 0 : index
      %101 = arith.index_cast %12 : i32 to index
      %c0_44 = arith.constant 0 : index
      %102 = vector.load %arg3[%c0_43, %101, %c0_44] : memref<1x20x32xf32, #tpu.memory_space<vmem>>, vector<1x1x32xf32>
      %103 = vector.shape_cast %102 : vector<1x1x32xf32> to vector<1x32xf32>
      %104 = arith.addf %103, %100 : vector<1x32xf32>
      %c0_45 = arith.constant 0 : index
      %105 = arith.index_cast %12 : i32 to index
      %c0_46 = arith.constant 0 : index
      %106 = vector.load %arg5[%c0_45, %105, %c0_46] : memref<1x20x32xf32, #tpu.memory_space<vmem>>, vector<1x1x32xf32>
      %107 = vector.shape_cast %106 : vector<1x1x32xf32> to vector<1x32xf32>
      %108 = vector.shape_cast %104 : vector<1x32xf32> to vector<1x1x32xf32>
      tpu.vector_store %arg5[%c0_45, %105, %c0_46], %108 {strides = array<i32>} : memref<1x20x32xf32, #tpu.memory_space<vmem>>, vector<1x1x32xf32>,
    } else {
    }
    %c1_i32_12 = arith.constant 1 : i32
    %21 = arith.addi %9, %c1_i32_12 : i32
    %22 = arith.index_cast %21 : i32 to index
    %23 = memref.load %arg1[%22] : memref<16xi32, #tpu.memory_space<smem>>
    %c1_i32_13 = arith.constant 1 : i32
    %24 = arith.addi %9, %c1_i32_13 : i32
    %25 = arith.index_cast %24 : i32 to index
    %26 = memref.load %arg2[%25] : memref<16xi32, #tpu.memory_space<smem>>
    %c0_i32_14 = arith.constant 0 : i32
    %27 = arith.cmpi sge, %23, %c0_i32_14 : i32
    %c20_i32_15 = arith.constant 20 : i32
    %28 = arith.cmpi slt, %23, %c20_i32_15 : i32
    %29 = arith.andi %27, %28 : i1
    %30 = arith.extui %29 : i1 to i32
    %c0_i32_16 = arith.constant 0 : i32
    %31 = arith.cmpi ne, %30, %c0_i32_16 : i32
    scf.if %31 {
      %98 = arith.index_cast %26 : i32 to index
      %c0_41 = arith.constant 0 : index
      %c0_42 = arith.constant 0 : index
      %99 = vector.load %arg4[%98, %c0_41, %c0_42] : memref<9x1x32xf32, #tpu.memory_space<vmem>>, vector<1x1x32xf32>
      %100 = vector.shape_cast %99 : vector<1x1x32xf32> to vector<1x32xf32>
      %c0_43 = arith.constant 0 : index
      %101 = arith.index_cast %23 : i32 to index
      %c0_44 = arith.constant 0 : index
      %102 = vector.load %arg3[%c0_43, %101, %c0_44] : memref<1x20x32xf32, #tpu.memory_space<vmem>>, vector<1x1x32xf32>
      %103 = vector.shape_cast %102 : vector<1x1x32xf32> to vector<1x32xf32>
      %104 = arith.addf %103, %100 : vector<1x32xf32>
      %c0_45 = arith.constant 0 : index
      %105 = arith.index_cast %23 : i32 to index
      %c0_46 = arith.constant 0 : index
      %106 = vector.load %arg5[%c0_45, %105, %c0_46] : memref<1x20x32xf32, #tpu.memory_space<vmem>>, vector<1x1x32xf32>
      %107 = vector.shape_cast %106 : vector<1x1x32xf32> to vector<1x32xf32>
      %108 = vector.shape_cast %104 : vector<1x32xf32> to vector<1x1x32xf32>
      tpu.vector_store %arg5[%c0_45, %105, %c0_46], %108 {strides = array<i32>} : memref<1x20x32xf32, #tpu.memory_space<vmem>>, vector<1x1x32xf32>,
    } else {
    }
    %c2_i32 = arith.constant 2 : i32
    %32 = arith.addi %9, %c2_i32 : i32
    %33 = arith.index_cast %32 : i32 to index
    %34 = memref.load %arg1[%33] : memref<16xi32, #tpu.memory_space<smem>>
    %c2_i32_17 = arith.constant 2 : i32
    %35 = arith.addi %9, %c2_i32_17 : i32
    %36 = arith.index_cast %35 : i32 to index
    %37 = memref.load %arg2[%36] : memref<16xi32, #tpu.memory_space<smem>>
    %c0_i32_18 = arith.constant 0 : i32
    %38 = arith.cmpi sge, %34, %c0_i32_18 : i32
    %c20_i32_19 = arith.constant 20 : i32
    %39 = arith.cmpi slt, %34, %c20_i32_19 : i32
    %40 = arith.andi %38, %39 : i1
    %41 = arith.extui %40 : i1 to i32
    %c0_i32_20 = arith.constant 0 : i32
    %42 = arith.cmpi ne, %41, %c0_i32_20 : i32
    scf.if %42 {
      %98 = arith.index_cast %37 : i32 to index
      %c0_41 = arith.constant 0 : index
      %c0_42 = arith.constant 0 : index
      %99 = vector.load %arg4[%98, %c0_41, %c0_42] : memref<9x1x32xf32, #tpu.memory_space<vmem>>, vector<1x1x32xf32>
      %100 = vector.shape_cast %99 : vector<1x1x32xf32> to vector<1x32xf32>
      %c0_43 = arith.constant 0 : index
      %101 = arith.index_cast %34 : i32 to index
      %c0_44 = arith.constant 0 : index
      %102 = vector.load %arg3[%c0_43, %101, %c0_44] : memref<1x20x32xf32, #tpu.memory_space<vmem>>, vector<1x1x32xf32>
      %103 = vector.shape_cast %102 : vector<1x1x32xf32> to vector<1x32xf32>
      %104 = arith.addf %103, %100 : vector<1x32xf32>
      %c0_45 = arith.constant 0 : index
      %105 = arith.index_cast %34 : i32 to index
      %c0_46 = arith.constant 0 : index
      %106 = vector.load %arg5[%c0_45, %105, %c0_46] : memref<1x20x32xf32, #tpu.memory_space<vmem>>, vector<1x1x32xf32>
      %107 = vector.shape_cast %106 : vector<1x1x32xf32> to vector<1x32xf32>
      %108 = vector.shape_cast %104 : vector<1x32xf32> to vector<1x1x32xf32>
      tpu.vector_store %arg5[%c0_45, %105, %c0_46], %108 {strides = array<i32>} : memref<1x20x32xf32, #tpu.memory_space<vmem>>, vector<1x1x32xf32>,
    } else {
    }
    %c3_i32 = arith.constant 3 : i32
    %43 = arith.addi %9, %c3_i32 : i32
    %44 = arith.index_cast %43 : i32 to index
    %45 = memref.load %arg1[%44] : memref<16xi32, #tpu.memory_space<smem>>
    %c3_i32_21 = arith.constant 3 : i32
    %46 = arith.addi %9, %c3_i32_21 : i32
    %47 = arith.index_cast %46 : i32 to index
    %48 = memref.load %arg2[%47] : memref<16xi32, #tpu.memory_space<smem>>
    %c0_i32_22 = arith.constant 0 : i32
    %49 = arith.cmpi sge, %45, %c0_i32_22 : i32
    %c20_i32_23 = arith.constant 20 : i32
    %50 = arith.cmpi slt, %45, %c20_i32_23 : i32
    %51 = arith.andi %49, %50 : i1
    %52 = arith.extui %51 : i1 to i32
    %c0_i32_24 = arith.constant 0 : i32
    %53 = arith.cmpi ne, %52, %c0_i32_24 : i32
    scf.if %53 {
      %98 = arith.index_cast %48 : i32 to index
      %c0_41 = arith.constant 0 : index
      %c0_42 = arith.constant 0 : index
      %99 = vector.load %arg4[%98, %c0_41, %c0_42] : memref<9x1x32xf32, #tpu.memory_space<vmem>>, vector<1x1x32xf32>
      %100 = vector.shape_cast %99 : vector<1x1x32xf32> to vector<1x32xf32>
      %c0_43 = arith.constant 0 : index
      %101 = arith.index_cast %45 : i32 to index
      %c0_44 = arith.constant 0 : index
      %102 = vector.load %arg3[%c0_43, %101, %c0_44] : memref<1x20x32xf32, #tpu.memory_space<vmem>>, vector<1x1x32xf32>
      %103 = vector.shape_cast %102 : vector<1x1x32xf32> to vector<1x32xf32>
      %104 = arith.addf %103, %100 : vector<1x32xf32>
      %c0_45 = arith.constant 0 : index
      %105 = arith.index_cast %45 : i32 to index
      %c0_46 = arith.constant 0 : index
      %106 = vector.load %arg5[%c0_45, %105, %c0_46] : memref<1x20x32xf32, #tpu.memory_space<vmem>>, vector<1x1x32xf32>
      %107 = vector.shape_cast %106 : vector<1x1x32xf32> to vector<1x32xf32>
      %108 = vector.shape_cast %104 : vector<1x32xf32> to vector<1x1x32xf32>
      tpu.vector_store %arg5[%c0_45, %105, %c0_46], %108 {strides = array<i32>} : memref<1x20x32xf32, #tpu.memory_space<vmem>>, vector<1x1x32xf32>,
    } else {
    }
    %c4_i32 = arith.constant 4 : i32
    %54 = arith.addi %9, %c4_i32 : i32
    %55 = arith.index_cast %54 : i32 to index
    %56 = memref.load %arg1[%55] : memref<16xi32, #tpu.memory_space<smem>>
    %c4_i32_25 = arith.constant 4 : i32
    %57 = arith.addi %9, %c4_i32_25 : i32
    %58 = arith.index_cast %57 : i32 to index
    %59 = memref.load %arg2[%58] : memref<16xi32, #tpu.memory_space<smem>>
    %c0_i32_26 = arith.constant 0 : i32
    %60 = arith.cmpi sge, %56, %c0_i32_26 : i32
    %c20_i32_27 = arith.constant 20 : i32
    %61 = arith.cmpi slt, %56, %c20_i32_27 : i32
    %62 = arith.andi %60, %61 : i1
    %63 = arith.extui %62 : i1 to i32
    %c0_i32_28 = arith.constant 0 : i32
    %64 = arith.cmpi ne, %63, %c0_i32_28 : i32
    scf.if %64 {
      %98 = arith.index_cast %59 : i32 to index
      %c0_41 = arith.constant 0 : index
      %c0_42 = arith.constant 0 : index
      %99 = vector.load %arg4[%98, %c0_41, %c0_42] : memref<9x1x32xf32, #tpu.memory_space<vmem>>, vector<1x1x32xf32>
      %100 = vector.shape_cast %99 : vector<1x1x32xf32> to vector<1x32xf32>
      %c0_43 = arith.constant 0 : index
      %101 = arith.index_cast %56 : i32 to index
      %c0_44 = arith.constant 0 : index
      %102 = vector.load %arg3[%c0_43, %101, %c0_44] : memref<1x20x32xf32, #tpu.memory_space<vmem>>, vector<1x1x32xf32>
      %103 = vector.shape_cast %102 : vector<1x1x32xf32> to vector<1x32xf32>
      %104 = arith.addf %103, %100 : vector<1x32xf32>
      %c0_45 = arith.constant 0 : index
      %105 = arith.index_cast %56 : i32 to index
      %c0_46 = arith.constant 0 : index
      %106 = vector.load %arg5[%c0_45, %105, %c0_46] : memref<1x20x32xf32, #tpu.memory_space<vmem>>, vector<1x1x32xf32>
      %107 = vector.shape_cast %106 : vector<1x1x32xf32> to vector<1x32xf32>
      %108 = vector.shape_cast %104 : vector<1x32xf32> to vector<1x1x32xf32>
      tpu.vector_store %arg5[%c0_45, %105, %c0_46], %108 {strides = array<i32>} : memref<1x20x32xf32, #tpu.memory_space<vmem>>, vector<1x1x32xf32>,
    } else {
    }
    %c5_i32 = arith.constant 5 : i32
    %65 = arith.addi %9, %c5_i32 : i32
    %66 = arith.index_cast %65 : i32 to index
    %67 = memref.load %arg1[%66] : memref<16xi32, #tpu.memory_space<smem>>
    %c5_i32_29 = arith.constant 5 : i32
    %68 = arith.addi %9, %c5_i32_29 : i32
    %69 = arith.index_cast %68 : i32 to index
    %70 = memref.load %arg2[%69] : memref<16xi32, #tpu.memory_space<smem>>
    %c0_i32_30 = arith.constant 0 : i32
    %71 = arith.cmpi sge, %67, %c0_i32_30 : i32
    %c20_i32_31 = arith.constant 20 : i32
    %72 = arith.cmpi slt, %67, %c20_i32_31 : i32
    %73 = arith.andi %71, %72 : i1
    %74 = arith.extui %73 : i1 to i32
    %c0_i32_32 = arith.constant 0 : i32
    %75 = arith.cmpi ne, %74, %c0_i32_32 : i32
    scf.if %75 {
      %98 = arith.index_cast %70 : i32 to index
      %c0_41 = arith.constant 0 : index
      %c0_42 = arith.constant 0 : index
      %99 = vector.load %arg4[%98, %c0_41, %c0_42] : memref<9x1x32xf32, #tpu.memory_space<vmem>>, vector<1x1x32xf32>
      %100 = vector.shape_cast %99 : vector<1x1x32xf32> to vector<1x32xf32>
      %c0_43 = arith.constant 0 : index
      %101 = arith.index_cast %67 : i32 to index
      %c0_44 = arith.constant 0 : index
      %102 = vector.load %arg3[%c0_43, %101, %c0_44] : memref<1x20x32xf32, #tpu.memory_space<vmem>>, vector<1x1x32xf32>
      %103 = vector.shape_cast %102 : vector<1x1x32xf32> to vector<1x32xf32>
      %104 = arith.addf %103, %100 : vector<1x32xf32>
      %c0_45 = arith.constant 0 : index
      %105 = arith.index_cast %67 : i32 to index
      %c0_46 = arith.constant 0 : index
      %106 = vector.load %arg5[%c0_45, %105, %c0_46] : memref<1x20x32xf32, #tpu.memory_space<vmem>>, vector<1x1x32xf32>
      %107 = vector.shape_cast %106 : vector<1x1x32xf32> to vector<1x32xf32>
      %108 = vector.shape_cast %104 : vector<1x32xf32> to vector<1x1x32xf32>
      tpu.vector_store %arg5[%c0_45, %105, %c0_46], %108 {strides = array<i32>} : memref<1x20x32xf32, #tpu.memory_space<vmem>>, vector<1x1x32xf32>,
    } else {
    }
    %c6_i32 = arith.constant 6 : i32
    %76 = arith.addi %9, %c6_i32 : i32
    %77 = arith.index_cast %76 : i32 to index
    %78 = memref.load %arg1[%77] : memref<16xi32, #tpu.memory_space<smem>>
    %c6_i32_33 = arith.constant 6 : i32
    %79 = arith.addi %9, %c6_i32_33 : i32
    %80 = arith.index_cast %79 : i32 to index
    %81 = memref.load %arg2[%80] : memref<16xi32, #tpu.memory_space<smem>>
    %c0_i32_34 = arith.constant 0 : i32
    %82 = arith.cmpi sge, %78, %c0_i32_34 : i32
    %c20_i32_35 = arith.constant 20 : i32
    %83 = arith.cmpi slt, %78, %c20_i32_35 : i32
    %84 = arith.andi %82, %83 : i1
    %85 = arith.extui %84 : i1 to i32
    %c0_i32_36 = arith.constant 0 : i32
    %86 = arith.cmpi ne, %85, %c0_i32_36 : i32
    scf.if %86 {
      %98 = arith.index_cast %81 : i32 to index
      %c0_41 = arith.constant 0 : index
      %c0_42 = arith.constant 0 : index
      %99 = vector.load %arg4[%98, %c0_41, %c0_42] : memref<9x1x32xf32, #tpu.memory_space<vmem>>, vector<1x1x32xf32>
      %100 = vector.shape_cast %99 : vector<1x1x32xf32> to vector<1x32xf32>
      %c0_43 = arith.constant 0 : index
      %101 = arith.index_cast %78 : i32 to index
      %c0_44 = arith.constant 0 : index
      %102 = vector.load %arg3[%c0_43, %101, %c0_44] : memref<1x20x32xf32, #tpu.memory_space<vmem>>, vector<1x1x32xf32>
      %103 = vector.shape_cast %102 : vector<1x1x32xf32> to vector<1x32xf32>
      %104 = arith.addf %103, %100 : vector<1x32xf32>
      %c0_45 = arith.constant 0 : index
      %105 = arith.index_cast %78 : i32 to index
      %c0_46 = arith.constant 0 : index
      %106 = vector.load %arg5[%c0_45, %105, %c0_46] : memref<1x20x32xf32, #tpu.memory_space<vmem>>, vector<1x1x32xf32>
      %107 = vector.shape_cast %106 : vector<1x1x32xf32> to vector<1x32xf32>
      %108 = vector.shape_cast %104 : vector<1x32xf32> to vector<1x1x32xf32>
      tpu.vector_store %arg5[%c0_45, %105, %c0_46], %108 {strides = array<i32>} : memref<1x20x32xf32, #tpu.memory_space<vmem>>, vector<1x1x32xf32>,
    } else {
    }
    %c7_i32 = arith.constant 7 : i32
    %87 = arith.addi %9, %c7_i32 : i32
    %88 = arith.index_cast %87 : i32 to index
    %89 = memref.load %arg1[%88] : memref<16xi32, #tpu.memory_space<smem>>
    %c7_i32_37 = arith.constant 7 : i32
    %90 = arith.addi %9, %c7_i32_37 : i32
    %91 = arith.index_cast %90 : i32 to index
    %92 = memref.load %arg2[%91] : memref<16xi32, #tpu.memory_space<smem>>
    %c0_i32_38 = arith.constant 0 : i32
    %93 = arith.cmpi sge, %89, %c0_i32_38 : i32
    %c20_i32_39 = arith.constant 20 : i32
    %94 = arith.cmpi slt, %89, %c20_i32_39 : i32
    %95 = arith.andi %93, %94 : i1
    %96 = arith.extui %95 : i1 to i32
    %c0_i32_40 = arith.constant 0 : i32
    %97 = arith.cmpi ne, %96, %c0_i32_40 : i32
    scf.if %97 {
      %98 = arith.index_cast %92 : i32 to index
      %c0_41 = arith.constant 0 : index
      %c0_42 = arith.constant 0 : index
      %99 = vector.load %arg4[%98, %c0_41, %c0_42] : memref<9x1x32xf32, #tpu.memory_space<vmem>>, vector<1x1x32xf32>
      %100 = vector.shape_cast %99 : vector<1x1x32xf32> to vector<1x32xf32>
      %c0_43 = arith.constant 0 : index
      %101 = arith.index_cast %89 : i32 to index
      %c0_44 = arith.constant 0 : index
      %102 = vector.load %arg3[%c0_43, %101, %c0_44] : memref<1x20x32xf32, #tpu.memory_space<vmem>>, vector<1x1x32xf32>
      %103 = vector.shape_cast %102 : vector<1x1x32xf32> to vector<1x32xf32>
      %104 = arith.addf %103, %100 : vector<1x32xf32>
      %c0_45 = arith.constant 0 : index
      %105 = arith.index_cast %89 : i32 to index
      %c0_46 = arith.constant 0 : index
      %106 = vector.load %arg5[%c0_45, %105, %c0_46] : memref<1x20x32xf32, #tpu.memory_space<vmem>>, vector<1x1x32xf32>
      %107 = vector.shape_cast %106 : vector<1x1x32xf32> to vector<1x32xf32>
      %108 = vector.shape_cast %104 : vector<1x32xf32> to vector<1x1x32xf32>
      tpu.vector_store %arg5[%c0_45, %105, %c0_46], %108 {strides = array<i32>} : memref<1x20x32xf32, #tpu.memory_space<vmem>>, vector<1x1x32xf32>,
    } else {
    }
    return
  }
  func.func @transform_0(%arg0: i32, %arg1: memref<16xi32, #tpu.memory_space<smem>>, %arg2: memref<16xi32, #tpu.memory_space<smem>>) -> (i32, i32, i32) {
    %c0_i32 = arith.constant 0 : i32
    %c0_i32_0 = arith.constant 0 : i32
    %c0_i32_1 = arith.constant 0 : i32
    return %arg0, %c0_i32, %c0_i32_0 : i32, i32, i32
  }
  func.func @transform_1(%arg0: i32, %arg1: memref<16xi32, #tpu.memory_space<smem>>, %arg2: memref<16xi32, #tpu.memory_space<smem>>) -> (i32, i32, i32) {
    %c0_i32 = arith.constant 0 : i32
    %c0_i32_0 = arith.constant 0 : i32
    %c0_i32_1 = arith.constant 0 : i32
    %c0_i32_2 = arith.constant 0 : i32
    return %c0_i32, %c0_i32_0, %c0_i32_1 : i32, i32, i32
  }
  func.func @transform_2(%arg0: i32, %arg1: memref<16xi32, #tpu.memory_space<smem>>, %arg2: memref<16xi32, #tpu.memory_space<smem>>) -> (i32, i32, i32) {
    %c0_i32 = arith.constant 0 : i32
    %c0_i32_0 = arith.constant 0 : i32
    %c0_i32_1 = arith.constant 0 : i32
    return %arg0, %c0_i32, %c0_i32_0 : i32, i32, i32
  }
}

</mosaic_0001>

<llo_original>
// kernel: learned_position_encoding.1
$region0: #{learned_position_encoding.1}
  #allocation0 [shape = 'u32[]', space=smem, size = 0x4, offset = 0x4, fixed_abs, tag = 'smem constant byte address 0x4 - core index']
  #allocation1 [shape = 'u32[72,128]{1,0:T(1,128)}', space=vmem, size = 0x9000, scoped, tag = 'internal scratch']
  #allocation2 [shape = 's32[1]{0}', space=sflag, size = 0x4, scoped, tag = 'scoped memory for learned_position_encoding.1']
  #allocation3 [shape = 'u8[512]{0}', space=smem, size = 0x200, scoped, tag = 'prefetched SMEM operand 0']
  #allocation4 [shape = 'u8[512]{0}', space=smem, size = 0x200, scoped, tag = 'prefetched SMEM operand 1']
  %s0 = inlined_call_operand.vmem [shape: s32[16], index: 0, kind: input, shape index: {}]
  %s1 = inlined_call_operand.vmem [shape: s32[16], index: 1, kind: input, shape index: {}]
  %s2 = inlined_call_operand.vmem [shape: f32[2,20,32], index: 2, kind: input, shape index: {}]
  %s3 = inlined_call_operand.vmem [shape: f32[9,1,32], index: 3, kind: input, shape index: {}]
  %s4 = inlined_call_operand.vmem [shape: f32[2,20,32], index: 4, kind: output, shape index: {}]
  %s5 = sld [smem:[#allocation0]]
  $region73: #{learned_position_encoding.1} parent=0
    _
  %s7 = ssub.s32 1, %s5
  %s8 = scalar_select 0, %s7, %s5
  %s10 = sshll.u32 %s0, 4
  %s11 = int_to_ptr.vmem [resolvable:$true] %s10
  %13 = dma.vmem_to_smem %s11, 16, [#allocation3], [#allocation2]
  %s15 = sshll.u32 %s1, 4
  %s16 = int_to_ptr.vmem [resolvable:$true] %s15
  %18 = dma.vmem_to_smem %s16, 16, [#allocation4], [#allocation2]
  %20 = dma.done [#allocation2], 32
  %21 = sfence
  loop: start=0, step=1, limit=4
  $region2: #{learned_position_encoding.1} parent=0 // loop_pre_header
    _
  $region3: #{learned_position_encoding.1} parent=0 // loop_header
    %s23 = sphi 0, %s27
    %p24 = scmp.ge.s32.totalorder %s23, 4
    %s33 = sphi 0, %s35
    %s36 = sphi 0, %s33
    %s37 = sphi 0, %s36
    %s53 = sphi 0, %s37
    %s57 = sphi 0, %s57
    %s59 = sphi 0, %s57
    %s60 = sphi 0, %s59
    %s74 = sphi 0, %s60
    %s80 = sphi 0, %s82
    %s83 = sphi 0, %s80
    %s84 = sphi 0, %s83
    %s100 = sphi 0, %s84
  $region4: #{learned_position_encoding.1} parent=0 // loop_header_branch
    %26 = sbr.rel (%p24) target = $region8
  $region5: #{learned_position_encoding.1} parent=0 // loop_body
    %s28 = ssub.s32 %s23, 1
    %s29 = ssub.s32 %s23, 2
    %s30 = sadd.s32 %s23, 1
    %s31 = ssub.s32 %s23, %s30
    %p32 = scmp.eq.s32.totalorder %s31, 0
    %s34 = sadd.s32 %s33, 1
    %s35 = scalar_select %p32, %s33, %s34
    %p38 = pneg %p32
    %p39 = scmp.eq.s32.totalorder %s23, 1
    %p40 = por %p38, %p39
    %p41 = scmp.ne.s32.totalorder %s33, %s36
    %p42 = scmp.eq.s32.totalorder %s23, 0
    %p43 = por %p41, %p42
    %p44 = scmp.ne.s32.totalorder %s33, %s36
    %p45 = scmp.eq.s32.totalorder %s28, 1
    %p46 = por %p44, %p45
    %p47 = scmp.ne.s32.totalorder %s36, %s37
    %p48 = scmp.eq.s32.totalorder %s28, 0
    %p49 = por %p47, %p48
    %p50 = scmp.ne.s32.totalorder %s36, %s37
    %p51 = scmp.eq.s32.totalorder %s29, 1
    %p52 = por %p50, %p51
    %p54 = scmp.ne.s32.totalorder %s37, %s53
    %p55 = scmp.eq.s32.totalorder %s29, 0
    %p56 = por %p54, %p55
    %s58 = sadd.s32 %s57, 1
    %p61 = scmp.eq.s32.totalorder %s23, 1
    %p62 = scmp.ne.s32.totalorder %s57, %s59
    %p63 = scmp.eq.s32.totalorder %s23, 0
    %p64 = por %p62, %p63
    %p65 = scmp.ne.s32.totalorder %s57, %s59
    %p66 = scmp.eq.s32.totalorder %s28, 1
    %p67 = por %p65, %p66
    %p68 = scmp.ne.s32.totalorder %s59, %s60
    %p69 = scmp.eq.s32.totalorder %s28, 0
    %p70 = por %p68, %p69
    %p71 = scmp.ne.s32.totalorder %s59, %s60
    %p72 = scmp.eq.s32.totalorder %s29, 1
    %p73 = por %p71, %p72
    %p75 = scmp.ne.s32.totalorder %s60, %s74
    %p76 = scmp.eq.s32.totalorder %s29, 0
    %p77 = por %p75, %p76
    %s78 = ssub.s32 %s23, %s30
    %p79 = scmp.eq.s32.totalorder %s78, 0
    %s81 = sadd.s32 %s80, 1
    %s82 = scalar_select %p79, %s80, %s81
    %p85 = pneg %p79
    %p86 = scmp.eq.s32.totalorder %s23, 1
    %p87 = por %p85, %p86
    %p88 = scmp.ne.s32.totalorder %s80, %s83
    %p89 = scmp.eq.s32.totalorder %s23, 0
    %p90 = por %p88, %p89
    %p91 = scmp.ne.s32.totalorder %s80, %s83
    %p92 = scmp.eq.s32.totalorder %s28, 1
    %p93 = por %p91, %p92
    %p94 = scmp.ne.s32.totalorder %s83, %s84
    %p95 = scmp.eq.s32.totalorder %s28, 0
    %p96 = por %p94, %p95
    %p97 = scmp.ne.s32.totalorder %s83, %s84
    %p98 = scmp.eq.s32.totalorder %s29, 1
    %p99 = por %p97, %p98
    %p101 = scmp.ne.s32.totalorder %s84, %s100
    %p102 = scmp.eq.s32.totalorder %s29, 0
    %p103 = por %p101, %p102
    %p104 = scmp.le.s32.totalorder 1, %s23
    %p105 = scmp.lt.s32.totalorder %s23, 3
    %p106 = pnand %p104, %p105
    %p107 = pneg %p106
    // Predicated region
    $region9: #{learned_position_encoding.1} parent=5 // pred_check
      _
    $region10: #{learned_position_encoding.1} parent=5 // pred_check_branch
      %109 = sbr.rel (%p106) target = $region12
    $region11: #{learned_position_encoding.1} parent=5 // pred_region
      %s110 = ssub.s32 %s23, 1
      // Predicated region
      $region13: #{learned_position_encoding.1} parent=11 // pred_check
        %p111 = pneg %p70
      $region14: #{learned_position_encoding.1} parent=11 // pred_check_branch
        %113 = sbr.rel (%p111) target = $region16
      $region15: #{learned_position_encoding.1} parent=11 // pred_region
        _
      $region16: #{learned_position_encoding.1} parent=11 // pred_fallthru
        _
    $region12: #{learned_position_encoding.1} parent=5 // pred_fallthru
      _
    %p114 = scmp.lt.s32.totalorder %s23, 2
    // Predicated region
    $region17: #{learned_position_encoding.1} parent=5 // pred_check
      %p115 = pneg %p114
    $region18: #{learned_position_encoding.1} parent=5 // pred_check_branch
      %117 = sbr.rel (%p115) target = $region20
    $region19: #{learned_position_encoding.1} parent=5 // pred_region
      // Predicated region
      $region21: #{learned_position_encoding.1} parent=19 // pred_check
        %p118 = pneg %p43
      $region22: #{learned_position_encoding.1} parent=19 // pred_check_branch
        %120 = sbr.rel (%p118) target = $region24
      $region23: #{learned_position_encoding.1} parent=19 // pred_region
        %p121 = scmp.lt.s32.totalorder %s23, 1
        %s122 = scalar_select %p121, %s23, 1
        %s123 = smul.addr %s122, 3
        %s124 = smul.addr %s123, 8
        %s125 = scalar_lea.vmem %s2, %s124
      $region24: #{learned_position_encoding.1} parent=19 // pred_fallthru
        _
    $region20: #{learned_position_encoding.1} parent=5 // pred_fallthru
      _
    %p126 = scmp.le.s32.totalorder 1, %s23
    %p127 = scmp.lt.s32.totalorder %s23, 3
    %p128 = pnand %p126, %p127
    %p129 = pneg %p128
    // Predicated region
    $region25: #{learned_position_encoding.1} parent=5 // pred_check
      _
    $region26: #{learned_position_encoding.1} parent=5 // pred_check_branch
      %131 = sbr.rel (%p128) target = $region28
    $region27: #{learned_position_encoding.1} parent=5 // pred_region
      %s132 = ssub.s32 %s23, 1
      %p133 = scmp.lt.s32.totalorder %s28, 1
      %s134 = scalar_select %p133, %s28, 1
      %s135 = smul.addr %s134, 3
      %s136 = smul.addr %s135, 8
      %s137 = scalar_lea.vmem %s2, %s136
      %p138 = pneg %p49
      %p139 = pneg %p46
      %p140 = pneg %p70
      %p141 = pneg %p67
      %p142 = pneg %p96
      %p143 = pneg %p93
      %p144 = scmp.lt.s32.totalorder %s28, 1
      %s145 = scalar_select %p144, %s28, 1
      %s146 = smul.addr %s145, 3
      %s147 = smul.addr %s146, 8
      %s148 = scalar_lea.vmem %s4, %s147
      %p149 = scmp.lt.s32.totalorder %s28, 1
      %s150 = scalar_select %p149, %s28, 1
      %s151 = smul.addr %s150, 3
      %s152 = smul.addr %s151, 8
      %s153 = scalar_lea.vmem %s2, %s152
      %p154 = scmp.lt.s32.totalorder %s28, 1
      %s155 = scalar_select %p154, %s28, 1
      %s156 = smul.addr %s155, 3
      %s157 = smul.addr %s156, 8
      %s158 = scalar_lea.vmem %s4, %s157
      %v159 = vld [vmem:[%s3] sm:$0x1]
      %v160 = vld [vmem:[%s153] sm:$0xff]
      %v161 = vld [vmem:[%s153 + $0x8] sm:$0xff]
      %v162 = vld [vmem:[%s153 + $0x10] sm:$0xf]
      %v164 = vperm.slane %v159, 0
      %v166 = vadd.f32 %v160, %v164
      %v167 = vadd.f32 %v161, %v164
      %v168 = vadd.f32 %v162, %v164
      %vm169 = vcmask 261120
      %170 = vst.msk [vmem:[%s158] sm:$0xff] %vm169, %v166
      %171 = vst.msk [vmem:[%s158 + $0x8] sm:$0xff] %vm169, %v167
      %vm172 = vcmask 257024
      %173 = vst.msk [vmem:[%s158 + $0x10] sm:$0xf] %vm172, %v168
      %s174 = smul.u32 %s28, 8
      %s175 = sld [smem:[#allocation3 + %s174]]
      %s176 = sld [smem:[#allocation4 + %s174]]
      %p177 = scmp.ge.s32.totalorder %s175, 0
      %p178 = scmp.lt.s32.totalorder %s175, 20
      %p179 = pnand %p177, %p178
      %p180 = pneg %p179
      // Predicated region
      $region29: #{learned_position_encoding.1} parent=27 // pred_check
        _
      $region30: #{learned_position_encoding.1} parent=27 // pred_check_branch
        %182 = sbr.rel (%p179) target = $region32
      $region31: #{learned_position_encoding.1} parent=27 // pred_region
        %s183 = scalar_lea.vmem %s3, %s176
        %v184 = vld [vmem:[%s183] sm:$0x1]
        %s185 = scalar_lea.vmem %s153, %s175
        %v186 = vld [vmem:[%s185] sm:$0x1]
        %v187 = vadd.f32 %v186, %v184
        %s188 = scalar_lea.vmem %s158, %s175
        %vm189 = vcmask 253952
        %190 = vst.msk [vmem:[%s188] sm:$0x1] %vm189, %v187
      $region32: #{learned_position_encoding.1} parent=27 // pred_fallthru
        _
      %s191 = sadd.s32 %s174, 1
      %s192 = sld [smem:[#allocation3 + %s191]]
      %s193 = sld [smem:[#allocation4 + %s191]]
      %p194 = scmp.ge.s32.totalorder %s192, 0
      %p195 = scmp.lt.s32.totalorder %s192, 20
      %p196 = pnand %p194, %p195
      %p197 = pneg %p196
      // Predicated region
      $region33: #{learned_position_encoding.1} parent=27 // pred_check
        _
      $region34: #{learned_position_encoding.1} parent=27 // pred_check_branch
        %199 = sbr.rel (%p196) target = $region36
      $region35: #{learned_position_encoding.1} parent=27 // pred_region
        %s200 = scalar_lea.vmem %s3, %s193
        %v201 = vld [vmem:[%s200] sm:$0x1]
        %s202 = scalar_lea.vmem %s153, %s192
        %v203 = vld [vmem:[%s202] sm:$0x1]
        %v204 = vadd.f32 %v203, %v201
        %s205 = scalar_lea.vmem %s158, %s192
        %vm206 = vcmask 253952
        %207 = vst.msk [vmem:[%s205] sm:$0x1] %vm206, %v204
      $region36: #{learned_position_encoding.1} parent=27 // pred_fallthru
        _
      %s208 = sadd.s32 %s174, 2
      %s209 = sld [smem:[#allocation3 + %s208]]
      %s210 = sld [smem:[#allocation4 + %s208]]
      %p211 = scmp.ge.s32.totalorder %s209, 0
      %p212 = scmp.lt.s32.totalorder %s209, 20
      %p213 = pnand %p211, %p212
      %p214 = pneg %p213
      // Predicated region
      $region37: #{learned_position_encoding.1} parent=27 // pred_check
        _
      $region38: #{learned_position_encoding.1} parent=27 // pred_check_branch
        %216 = sbr.rel (%p213) target = $region40
      $region39: #{learned_position_encoding.1} parent=27 // pred_region
        %s217 = scalar_lea.vmem %s3, %s210
        %v218 = vld [vmem:[%s217] sm:$0x1]
        %s219 = scalar_lea.vmem %s153, %s209
        %v220 = vld [vmem:[%s219] sm:$0x1]
        %v221 = vadd.f32 %v220, %v218
        %s222 = scalar_lea.vmem %s158, %s209
        %vm223 = vcmask 253952
        %224 = vst.msk [vmem:[%s222] sm:$0x1] %vm223, %v221
      $region40: #{learned_position_encoding.1} parent=27 // pred_fallthru
        _
      %s225 = sadd.s32 %s174, 3
      %s226 = sld [smem:[#allocation3 + %s225]]
      %s227 = sld [smem:[#allocation4 + %s225]]
      %p228 = scmp.ge.s32.totalorder %s226, 0
      %p229 = scmp.lt.s32.totalorder %s226, 20
      %p230 = pnand %p228, %p229
      %p231 = pneg %p230
      // Predicated region
      $region41: #{learned_position_encoding.1} parent=27 // pred_check
        _
      $region42: #{learned_position_encoding.1} parent=27 // pred_check_branch
        %233 = sbr.rel (%p230) target = $region44
      $region43: #{learned_position_encoding.1} parent=27 // pred_region
        %s234 = scalar_lea.vmem %s3, %s227
        %v235 = vld [vmem:[%s234] sm:$0x1]
        %s236 = scalar_lea.vmem %s153, %s226
        %v237 = vld [vmem:[%s236] sm:$0x1]
        %v238 = vadd.f32 %v237, %v235
        %s239 = scalar_lea.vmem %s158, %s226
        %vm240 = vcmask 253952
        %241 = vst.msk [vmem:[%s239] sm:$0x1] %vm240, %v238
      $region44: #{learned_position_encoding.1} parent=27 // pred_fallthru
        _
      %s242 = sadd.s32 %s174, 4
      %s243 = sld [smem:[#allocation3 + %s242]]
      %s244 = sld [smem:[#allocation4 + %s242]]
      %p245 = scmp.ge.s32.totalorder %s243, 0
      %p246 = scmp.lt.s32.totalorder %s243, 20
      %p247 = pnand %p245, %p246
      %p248 = pneg %p247
      // Predicated region
      $region45: #{learned_position_encoding.1} parent=27 // pred_check
        _
      $region46: #{learned_position_encoding.1} parent=27 // pred_check_branch
        %250 = sbr.rel (%p247) target = $region48
      $region47: #{learned_position_encoding.1} parent=27 // pred_region
        %s251 = scalar_lea.vmem %s3, %s244
        %v252 = vld [vmem:[%s251] sm:$0x1]
        %s253 = scalar_lea.vmem %s153, %s243
        %v254 = vld [vmem:[%s253] sm:$0x1]
        %v255 = vadd.f32 %v254, %v252
        %s256 = scalar_lea.vmem %s158, %s243
        %vm257 = vcmask 253952
        %258 = vst.msk [vmem:[%s256] sm:$0x1] %vm257, %v255
      $region48: #{learned_position_encoding.1} parent=27 // pred_fallthru
        _
      %s259 = sadd.s32 %s174, 5
      %s260 = sld [smem:[#allocation3 + %s259]]
      %s261 = sld [smem:[#allocation4 + %s259]]
      %p262 = scmp.ge.s32.totalorder %s260, 0
      %p263 = scmp.lt.s32.totalorder %s260, 20
      %p264 = pnand %p262, %p263
      %p265 = pneg %p264
      // Predicated region
      $region49: #{learned_position_encoding.1} parent=27 // pred_check
        _
      $region50: #{learned_position_encoding.1} parent=27 // pred_check_branch
        %267 = sbr.rel (%p264) target = $region52
      $region51: #{learned_position_encoding.1} parent=27 // pred_region
        %s268 = scalar_lea.vmem %s3, %s261
        %v269 = vld [vmem:[%s268] sm:$0x1]
        %s270 = scalar_lea.vmem %s153, %s260
        %v271 = vld [vmem:[%s270] sm:$0x1]
        %v272 = vadd.f32 %v271, %v269
        %s273 = scalar_lea.vmem %s158, %s260
        %vm274 = vcmask 253952
        %275 = vst.msk [vmem:[%s273] sm:$0x1] %vm274, %v272
      $region52: #{learned_position_encoding.1} parent=27 // pred_fallthru
        _
      %s276 = sadd.s32 %s174, 6
      %s277 = sld [smem:[#allocation3 + %s276]]
      %s278 = sld [smem:[#allocation4 + %s276]]
      %p279 = scmp.ge.s32.totalorder %s277, 0
      %p280 = scmp.lt.s32.totalorder %s277, 20
      %p281 = pnand %p279, %p280
      %p282 = pneg %p281
      // Predicated region
      $region53: #{learned_position_encoding.1} parent=27 // pred_check
        _
      $region54: #{learned_position_encoding.1} parent=27 // pred_check_branch
        %284 = sbr.rel (%p281) target = $region56
      $region55: #{learned_position_encoding.1} parent=27 // pred_region
        %s285 = scalar_lea.vmem %s3, %s278
        %v286 = vld [vmem:[%s285] sm:$0x1]
        %s287 = scalar_lea.vmem %s153, %s277
        %v288 = vld [vmem:[%s287] sm:$0x1]
        %v289 = vadd.f32 %v288, %v286
        %s290 = scalar_lea.vmem %s158, %s277
        %vm291 = vcmask 253952
        %292 = vst.msk [vmem:[%s290] sm:$0x1] %vm291, %v289
      $region56: #{learned_position_encoding.1} parent=27 // pred_fallthru
        _
      %s293 = sadd.s32 %s174, 7
      %s294 = sld [smem:[#allocation3 + %s293]]
      %s295 = sld [smem:[#allocation4 + %s293]]
      %p296 = scmp.ge.s32.totalorder %s294, 0
      %p297 = scmp.lt.s32.totalorder %s294, 20
      %p298 = pnand %p296, %p297
      %p299 = pneg %p298
      // Predicated region
      $region57: #{learned_position_encoding.1} parent=27 // pred_check
        _
      $region58: #{learned_position_encoding.1} parent=27 // pred_check_branch
        %301 = sbr.rel (%p298) target = $region60
      $region59: #{learned_position_encoding.1} parent=27 // pred_region
        %s302 = scalar_lea.vmem %s3, %s295
        %v303 = vld [vmem:[%s302] sm:$0x1]
        %s304 = scalar_lea.vmem %s153, %s294
        %v305 = vld [vmem:[%s304] sm:$0x1]
        %v306 = vadd.f32 %v305, %v303
        %s307 = scalar_lea.vmem %s158, %s294
        %vm308 = vcmask 253952
        %309 = vst.msk [vmem:[%s307] sm:$0x1] %vm308, %v306
      $region60: #{learned_position_encoding.1} parent=27 // pred_fallthru
        _
      %p310 = scmp.lt.s32.totalorder %s28, 1
      %s311 = scalar_select %p310, %s28, 1
      %s312 = smul.addr %s311, 3
      %s313 = smul.addr %s312, 8
      %s314 = scalar_lea.vmem %s4, %s313
      // Predicated region
      $region61: #{learned_position_encoding.1} parent=27 // pred_check
        %p315 = pneg %p93
      $region62: #{learned_position_encoding.1} parent=27 // pred_check_branch
        %317 = sbr.rel (%p315) target = $region64
      $region63: #{learned_position_encoding.1} parent=27 // pred_region
        _
      $region64: #{learned_position_encoding.1} parent=27 // pred_fallthru
        _
    $region28: #{learned_position_encoding.1} parent=5 // pred_fallthru
      _
    %p318 = scmp.le.s32.totalorder 2, %s23
    // Predicated region
    $region65: #{learned_position_encoding.1} parent=5 // pred_check
      %p319 = pneg %p318
    $region66: #{learned_position_encoding.1} parent=5 // pred_check_branch
      %321 = sbr.rel (%p319) target = $region68
    $region67: #{learned_position_encoding.1} parent=5 // pred_region
      %s322 = ssub.s32 %s23, 2
      // Predicated region
      $region69: #{learned_position_encoding.1} parent=67 // pred_check
        %p323 = pneg %p99
      $region70: #{learned_position_encoding.1} parent=67 // pred_check_branch
        %325 = sbr.rel (%p323) target = $region72
      $region71: #{learned_position_encoding.1} parent=67 // pred_region
        %p326 = scmp.lt.s32.totalorder %s29, 1
        %s327 = scalar_select %p326, %s29, 1
        %s328 = smul.addr %s327, 3
        %s329 = smul.addr %s328, 8
        %s330 = scalar_lea.vmem %s4, %s329
      $region72: #{learned_position_encoding.1} parent=67 // pred_fallthru
        _
    $region68: #{learned_position_encoding.1} parent=5 // pred_fallthru
      _
  $region6: #{learned_position_encoding.1} parent=0 // loop_footer
    %s27 = sadd.s32 1, %s23
  $region7: #{learned_position_encoding.1} parent=0 // loop_footer_branch
    %22 = sbr.rel target = $region3
  $region8: #{learned_position_encoding.1} parent=0 // loop_exit
    _

</llo_original>
